<compile_context>
chip_gen: v5e
topology: v5e:2x2
jax: 0.10.0
libtpu: 0.0.40
codegen_flags: <defaults>
</compile_context>

<pallas_src>
import functools

import jax
import jax.numpy as jnp
from jax import lax
from jax.experimental import pallas as pl
from jax.experimental.pallas import tpu as pltpu

BN_EPS = 1e-5


# ---------------------------------------------------------------------------
# Stage A: 1x1 conv (MXU) + per-tile BN1 partial statistics.
#   x_ref : (nb, C, HW)   NCHW input, spatial flattened, tile of whole images
#   w1_ref: (C, C)   b1_ref: (C, 1)
#   z1_ref: (C, nb*HW)    channel-major, lane-dense conv output (store_dtype)
#   st_ref: (1, C, 2)     per-tile (sum, sum of squares) per channel, f32
# ---------------------------------------------------------------------------
def _conv1_stats_kernel(x_ref, w1_ref, b1_ref, z1_ref, st_ref, *, nb, hw, mm_dtype):
    c = w1_ref.shape[0]
    w = w1_ref[...].astype(mm_dtype)
    b = b1_ref[...]                                            # (C,1) f32

    def body(j, carry):
        ssum, ssq = carry
        xj = x_ref[j].astype(mm_dtype)                         # (C, HW)
        z = jnp.dot(w, xj, preferred_element_type=jnp.float32) + b
        off = pl.multiple_of(j * hw, hw)
        z1_ref[:, pl.ds(off, hw)] = z.astype(z1_ref.dtype)
        return (ssum + jnp.sum(z, axis=1, keepdims=True),
                ssq + jnp.sum(z * z, axis=1, keepdims=True))

    ssum, ssq = lax.fori_loop(
        0, nb, body,
        (jnp.zeros((c, 1), jnp.float32), jnp.zeros((c, 1), jnp.float32)),
        unroll=True)
    # NOTE: (1,C,2) has a 2-wide lane dim (masked vst); kept because it is tiny
    # and this layout is known to lower cleanly.
    st_ref[...] = jnp.concatenate([ssum, ssq], axis=1)[None]


# ---------------------------------------------------------------------------
# Stage B: folded BN1 + ReLU -> symmetric 3x3 conv as two accumulated MXU dots
#          + per-tile BN2 partial statistics.
#   z1_ref : (C, T)  T = nb*H*W (whole images only, so no cross-tile halo)
#   sc1/sh1: (C, 1)  folded BN1 scale/shift (f32)
#   a2_ref : (C, C) center weight   b2_ref: (C, C) ring weight   bias2: (C, 1)
#   z2_ref : (C, T) store_dtype     st_ref: (1, C, 2) f32
# ---------------------------------------------------------------------------
def _bn1_conv2_stats_kernel(z1_ref, sc1_ref, sh1_ref, a2_ref, b2_ref, bias2_ref,
                            z2_ref, st_ref, *, img_h, img_w, mm_dtype):
    t = z1_ref.shape[1]
    z1 = z1_ref[...].astype(jnp.float32)
    y = jnp.maximum(sc1_ref[...] * z1 + sh1_ref[...], 0.0)      # (C, T) f32

    # Zero-padded 3x3 box sum, separable (4 adds): XLU lane rolls + edge masks,
    # no materialized shifted copies and no explicit zero padding.
    idx = lax.broadcasted_iota(jnp.int32, (1, t), 1)
    wp = idx % img_w
    hp = (idx // img_w) % img_h
    left = pltpu.roll(y, shift=1, axis=1)                       # y[p-1]
    right = pltpu.roll(y, shift=t - 1, axis=1)                  # y[p+1]
    hsum = (y + jnp.where(wp > 0, left, 0.0)
              + jnp.where(wp < img_w - 1, right, 0.0))
    up = pltpu.roll(hsum, shift=img_w, axis=1)                  # hsum[p-W]
    down = pltpu.roll(hsum, shift=t - img_w, axis=1)            # hsum[p+W]
    box = (hsum + jnp.where(hp > 0, up, 0.0)
                + jnp.where(hp < img_h - 1, down, 0.0))
    ring = box - y                                              # 8-neighbour sum

    # Two accumulated dots instead of a (2C,T) concat + single dot.
    z2 = jnp.dot(a2_ref[...].astype(mm_dtype), y.astype(mm_dtype),
                 preferred_element_type=jnp.float32)
    z2 = z2 + jnp.dot(b2_ref[...].astype(mm_dtype), ring.astype(mm_dtype),
                      preferred_element_type=jnp.float32)
    z2 = z2 + bias2_ref[...]

    z2_ref[...] = z2.astype(z2_ref.dtype)
    st_ref[...] = jnp.concatenate(
        [jnp.sum(z2, axis=1, keepdims=True),
         jnp.sum(z2 * z2, axis=1, keepdims=True)], axis=1)[None]


# ---------------------------------------------------------------------------
# Stage C: folded BN2 + ReLU, written directly back in NCHW layout.
#   z2_ref: (C, nb*HW) store_dtype   o_ref: (nb, C, HW) f32
# ---------------------------------------------------------------------------
def _bn2_relu_kernel(z2_ref, sc2_ref, sh2_ref, o_ref, *, nb, hw):
    sc = sc2_ref[...]
    sh = sh2_ref[...]

    def body(j, carry):
        off = pl.multiple_of(j * hw, hw)
        z = z2_ref[:, pl.ds(off, hw)].astype(jnp.float32)
        o_ref[j] = jnp.maximum(sc * z + sh, 0.0).astype(o_ref.dtype)
        return carry

    lax.fori_loop(0, nb, body, 0, unroll=True)


# ---------------------------------------------------------------------------
# Wrapper glue
# ---------------------------------------------------------------------------
def _fold_bn(pstats, count, gamma, beta):
    """Reduce per-tile (sum, sumsq) partials and fold BN into scale/shift."""
    s = pstats.sum(axis=0)                                      # (C, 2)
    mean = s[:, 0] / count
    var = jnp.maximum(s[:, 1] / count - mean * mean, 0.0)       # clamp cancellation
    scale = gamma * lax.rsqrt(var + BN_EPS)
    shift = beta - mean * scale
    c = gamma.shape[0]
    return scale.reshape(c, 1), shift.reshape(c, 1)


def _chip_tuning():
    """Generation-keyed tiling: (target_lanes, want_even_tiles, vmem_limit)."""
    vmem_cap = 128 * 1024 * 1024
    try:
        info = pltpu.get_tpu_info()
        vmem_cap = int(getattr(info, "vmem_capacity_bytes", vmem_cap))
    except Exception:
        pass
    if vmem_cap <= 64 * 1024 * 1024:
        # v7x: 64 MiB VMEM, 2 TCs -> cap per-step VMEM, keep an even >=2 grid.
        return dict(target_lanes=4096, want_even_tiles=True,
                    vmem_limit_bytes=48 * 1024 * 1024)
    # v5e / v6e: 128 MiB VMEM, single TC -> bigger lane tiles, raised scoped limit.
    return dict(target_lanes=8192, want_even_tiles=False,
                vmem_limit_bytes=96 * 1024 * 1024)


def _choose_tile_images(n, hw, target_lanes, want_even_tiles):
    """Largest image-aligned lane tile that divides the batch, keeps the lane
    dim 128-aligned, fits the lane budget, and (on 2-TC chips) leaves an even
    >=2-step grid so both TensorCores get work."""
    divisors = [d for d in range(1, n + 1)
                if n % d == 0 and (d * hw) % 128 == 0]
    if not divisors:
        return n                      # single tile: block == full array (legal)
    cap = max(1, target_lanes // max(hw, 1))
    fitting = [d for d in divisors if d <= cap] or [min(divisors)]
    if want_even_tiles and n >= 2:
        even = [d for d in fitting if (n // d) % 2 == 0]
        if even:
            return max(even)
        multi = [d for d in fitting if (n // d) >= 2]
        if multi:
            return max(multi)
    return max(fitting)


def scnn_block2_forward(x, params, *, tile_images=None,
                        matmul_dtype=jnp.bfloat16,
                        store_dtype=jnp.bfloat16):
    """ScnnBlock2 forward: relu(bn2(conv2(relu(bn1(conv1(x)))))), NCHW in/out.

    matmul_dtype: MXU operand dtype (f32 accumulation; bf16 is the right call on
      v5e/v6e/v7x — all BN/ReLU math stays f32).
    store_dtype: dtype of the z1/z2 HBM intermediates (bf16 halves the dominant
      HBM traffic; use f32 only for bit-accuracy checks).
    """
    w1, b1, g1, be1, a2, b2, bias2, g2, be2 = params
    n, c, h, w = x.shape
    hw = h * w
    tune = _chip_tuning()
    nb = (tile_images if tile_images is not None
          else _choose_tile_images(n, hw, tune["target_lanes"],
                                   tune["want_even_tiles"]))
    assert n % nb == 0, "tile_images must divide the batch"
    num_tiles = n // nb
    t = nb * hw
    count = jnp.float32(n * hw)
    cp = pltpu.CompilerParams(dimension_semantics=("parallel",),
                              vmem_limit_bytes=tune["vmem_limit_bytes"])

    # Free reshape (contiguous NCHW). Input dtype preserved; kernels cast at the
    # MXU operand, so bf16 inputs stream at half the bytes.
    x3 = x.reshape(n, c, hw)

    # ---- stage A: conv1 + partial BN1 stats --------------------------------
    z1, pstats1 = pl.pallas_call(
        functools.partial(_conv1_stats_kernel, nb=nb, hw=hw, mm_dtype=matmul_dtype),
        grid=(num_tiles,),
        in_specs=[
            pl.BlockSpec((nb, c, hw), lambda i: (i, 0, 0)),
            pl.BlockSpec((c, c), lambda i: (0, 0)),
            pl.BlockSpec((c, 1), lambda i: (0, 0)),
        ],
        out_specs=[
            pl.BlockSpec((c, t), lambda i: (0, i)),
            pl.BlockSpec((1, c, 2), lambda i: (i, 0, 0)),
        ],
        out_shape=[
            jax.ShapeDtypeStruct((c, n * hw), store_dtype),
            jax.ShapeDtypeStruct((num_tiles, c, 2), jnp.float32),
        ],
        compiler_params=cp,
    )(x3, w1, b1.reshape(c, 1))

    scale1, shift1 = _fold_bn(pstats1, count, g1, be1)

    # ---- stage B: BN1+ReLU -> symmetric 3x3 conv + partial BN2 stats -------
    z2, pstats2 = pl.pallas_call(
        functools.partial(_bn1_conv2_stats_kernel, img_h=h, img_w=w,
                          mm_dtype=matmul_dtype),
        grid=(num_tiles,),
        in_specs=[
            pl.BlockSpec((c, t), lambda i: (0, i)),
            pl.BlockSpec((c, 1), lambda i: (0, 0)),
            pl.BlockSpec((c, 1), lambda i: (0, 0)),
            pl.BlockSpec((c, c), lambda i: (0, 0)),
            pl.BlockSpec((c, c), lambda i: (0, 0)),
            pl.BlockSpec((c, 1), lambda i: (0, 0)),
        ],
        out_specs=[
            pl.BlockSpec((c, t), lambda i: (0, i)),
            pl.BlockSpec((1, c, 2), lambda i: (i, 0, 0)),
        ],
        out_shape=[
            jax.ShapeDtypeStruct((c, n * hw), store_dtype),
            jax.ShapeDtypeStruct((num_tiles, c, 2), jnp.float32),
        ],
        compiler_params=cp,
    )(z1, scale1, shift1, a2, b2, bias2.reshape(c, 1))

    scale2, shift2 = _fold_bn(pstats2, count, g2, be2)

    # ---- stage C: BN2 + ReLU, written straight back in NCHW ----------------
    out = pl.pallas_call(
        functools.partial(_bn2_relu_kernel, nb=nb, hw=hw),
        grid=(num_tiles,),
        in_specs=[
            pl.BlockSpec((c, t), lambda i: (0, i)),
            pl.BlockSpec((c, 1), lambda i: (0, 0)),
            pl.BlockSpec((c, 1), lambda i: (0, 0)),
        ],
        out_specs=pl.BlockSpec((nb, c, hw), lambda i: (i, 0, 0)),
        out_shape=jax.ShapeDtypeStruct((n, c, hw), jnp.float32),
        compiler_params=cp,
    )(z2, scale2, shift2)

    return out.reshape(n, c, h, w)


# ---------------------------------------------------------------------------
# Pure-JAX reference (same math) for correctness checking
# ---------------------------------------------------------------------------
def reference_forward(x, params):
    w1, b1, g1, be1, a2, b2, bias2, g2, be2 = params
    n, c, h, w = x.shape

    def bn_relu(z, g, be):
        mean = z.mean(axis=(0, 2, 3), keepdims=True)
        var = ((z - mean) ** 2).mean(axis=(0, 2, 3), keepdims=True)
        zh = (z - mean) / jnp.sqrt(var + BN_EPS)
        return jnp.maximum(g[None, :, None, None] * zh + be[None, :, None, None], 0.0)

    z1 = jnp.einsum('oc,nchw->nohw', w1, x) + b1[None, :, None, None]
    y1 = bn_relu(z1, g1, be1)

    k = jnp.broadcast_to(b2[:, :, None, None], (c, c, 3, 3))
    k = k.at[:, :, 1, 1].set(a2)
    z2 = lax.conv_general_dilated(
        y1, k, window_strides=(1, 1), padding=((1, 1), (1, 1)),
        dimension_numbers=('NCHW', 'OIHW', 'NCHW')) + bias2[None, :, None, None]
    return bn_relu(z2, g2, be2)


if __name__ == "__main__":
    N, C, H, W = 2, 4, 16, 16     # input_dim = output_dim = C
    key = jax.random.PRNGKey(0)
    ks = jax.random.split(key, 10)

    x = jax.random.normal(ks[0], (N, C, H, W), jnp.float32)

    # Deterministic synthetic parameters (shapes per the assumed symm-pres convs).
    w1 = 0.3 * jax.random.normal(ks[1], (C, C), jnp.float32)       # conv1 1x1 weight
    b1 = 0.1 * jax.random.normal(ks[2], (C,), jnp.float32)         # conv1 bias
    a2 = 0.3 * jax.random.normal(ks[3], (C, C), jnp.float32)       # conv2 center weight
    b2 = 0.3 * jax.random.normal(ks[4], (C, C), jnp.float32)       # conv2 ring weight
    bias2 = 0.1 * jax.random.normal(ks[5], (C,), jnp.float32)      # conv2 bias
    g1 = 1.0 + 0.1 * jax.random.normal(ks[6], (C,), jnp.float32)   # bn1 gamma
    be1 = 0.1 * jax.random.normal(ks[7], (C,), jnp.float32)        # bn1 beta
    g2 = 1.0 + 0.1 * jax.random.normal(ks[8], (C,), jnp.float32)   # bn2 gamma
    be2 = 0.1 * jax.random.normal(ks[9], (C,), jnp.float32)        # bn2 beta

    params = (w1, b1, g1, be1, a2, b2, bias2, g2, be2)
    ref = reference_forward(x, params)

    # Bit-accurate path: f32 MXU operands + f32 intermediates, tile_images=1
    # => 2 grid tiles, exercising cross-tile partial-stat accumulation.
    out = jax.block_until_ready(
        scnn_block2_forward(x, params, tile_images=1,
                            matmul_dtype=jnp.float32, store_dtype=jnp.float32))
    assert out.shape == (N, C, H, W)
    err = float(jnp.max(jnp.abs(out - ref)))
    if not err < 2e-3:
        raise SystemExit("f32 path mismatch vs reference, max abs err = %e" % err)

    # Default fast path: bf16 MXU operands + bf16 HBM intermediates, auto tiling.
    out_bf = jax.block_until_ready(scnn_block2_forward(x, params))
    err_bf = float(jnp.max(jnp.abs(out_bf - ref)))
    if not err_bf < 2e-1:
        raise SystemExit("bf16 path mismatch vs reference, max abs err = %e" % err_bf)

    print("KERNEL_OK")
</pallas_src>

<mosaic_0001>
module attributes {stable_mosaic.version = 11 : i64} {
  func.func @_conv1_stats_kernel(%arg0: i32, %arg1: memref<1x4x256xf32, #tpu.memory_space<vmem>>, %arg2: memref<4x4xf32, #tpu.memory_space<vmem>>, %arg3: memref<4x1xf32, #tpu.memory_space<vmem>>, %arg4: memref<4x256xf32, #tpu.memory_space<vmem>>, %arg5: memref<1x4x2xf32, #tpu.memory_space<vmem>>) attributes {dimension_semantics = [#tpu.dimension_semantics<parallel>], iteration_bounds = array<i64: 2>, scalar_prefetch = 0 : i64, scratch_operands = 0 : i64, tpu.core_type = #tpu.core_type<tc>, window_params = [{transform_indices = @transform_0, window_bounds = array<i64: 1, 4, 256>}, {pipeline_mode = #tpu.pipeline_mode<synchronous>, transform_indices = @transform_1, window_bounds = array<i64: 4, 4>}, {pipeline_mode = #tpu.pipeline_mode<synchronous>, transform_indices = @transform_2, window_bounds = array<i64: 4, 1>}, {transform_indices = @transform_3, window_bounds = array<i64: 4, 256>}, {transform_indices = @transform_4, window_bounds = array<i64: 1, 4, 2>}]} {
    %c0 = arith.constant 0 : index
    %c0_0 = arith.constant 0 : index
    %0 = vector.load %arg2[%c0, %c0_0] : memref<4x4xf32, #tpu.memory_space<vmem>>, vector<4x4xf32>
    %c0_1 = arith.constant 0 : index
    %c0_2 = arith.constant 0 : index
    %1 = vector.load %arg3[%c0_1, %c0_2] : memref<4x1xf32, #tpu.memory_space<vmem>>, vector<4x1xf32>
    %cst = arith.constant 0.000000e+00 : f32
    %2 = vector.broadcast %cst : f32 to vector<4x1xf32>
    %cst_3 = arith.constant 0.000000e+00 : f32
    %3 = vector.broadcast %cst_3 : f32 to vector<4x1xf32>
    %c0_i32 = arith.constant 0 : i32
    %4 = arith.index_cast %c0_i32 : i32 to index
    %c0_4 = arith.constant 0 : index
    %c0_5 = arith.constant 0 : index
    %5 = vector.load %arg1[%4, %c0_4, %c0_5] : memref<1x4x256xf32, #tpu.memory_space<vmem>>, vector<1x4x256xf32>
    %6 = vector.shape_cast %5 : vector<1x4x256xf32> to vector<4x256xf32>
    %cst_6 = arith.constant dense<0.000000e+00> : vector<4x256xf32>
    %7 = tpu.matmul %0, %6, %cst_6 {dimension_numbers = #tpu.dot_dimension_numbers<[1], [0], [0], [1], [0, 0, 1, 1], [], []>} : vector<4x4xf32>, vector<4x256xf32>, vector<4x256xf32> -> vector<4x256xf32>
    %8 = vector.broadcast %1 : vector<4x1xf32> to vector<4x256xf32>
    %9 = arith.addf %7, %8 : vector<4x256xf32>
    %c256_i32 = arith.constant 256 : i32
    %10 = arith.muli %c0_i32, %c256_i32 : i32
    %11 = tpu.assume_multiple %10, 256 : i32
    %c0_7 = arith.constant 0 : index
    %12 = arith.index_cast %11 : i32 to index
    %13 = vector.load %arg4[%c0_7, %12] : memref<4x256xf32, #tpu.memory_space<vmem>>, vector<4x256xf32>
    tpu.vector_store %arg4[%c0_7, %12], %9 {strides = array<i32>} : memref<4x256xf32, #tpu.memory_space<vmem>>, vector<4x256xf32>,
    %cst_8 = arith.constant dense<0.000000e+00> : vector<4xf32>
    %14 = vector.multi_reduction <add>, %9, %cst_8 [1] : vector<4x256xf32> to vector<4xf32>
    %15 = vector.shape_cast %14 : vector<4xf32> to vector<4x1xf32>
    %16 = arith.addf %2, %15 : vector<4x1xf32>
    %17 = arith.mulf %9, %9 : vector<4x256xf32>
    %cst_9 = arith.constant dense<0.000000e+00> : vector<4xf32>
    %18 = vector.multi_reduction <add>, %17, %cst_9 [1] : vector<4x256xf32> to vector<4xf32>
    %19 = vector.shape_cast %18 : vector<4xf32> to vector<4x1xf32>
    %20 = arith.addf %3, %19 : vector<4x1xf32>
    %c1_i32 = arith.constant 1 : i32
    %21 = tpu.concatenate %16, %20 in 1 : vector<4x1xf32>, vector<4x1xf32> -> vector<4x2xf32>
    %22 = vector.shape_cast %21 : vector<4x2xf32> to vector<1x4x2xf32>
    %c0_10 = arith.constant 0 : index
    %c0_11 = arith.constant 0 : index
    %c0_12 = arith.constant 0 : index
    %23 = vector.load %arg5[%c0_10, %c0_11, %c0_12] : memref<1x4x2xf32, #tpu.memory_space<vmem>>, vector<1x4x2xf32>
    tpu.vector_store %arg5[%c0_10, %c0_11, %c0_12], %22 {strides = array<i32>} : memref<1x4x2xf32, #tpu.memory_space<vmem>>, vector<1x4x2xf32>,
    return
  }
  func.func @transform_0(%arg0: i32) -> (i32, i32, i32) {
    %c0_i32 = arith.constant 0 : i32
    %c0_i32_0 = arith.constant 0 : i32
    %c0_i32_1 = arith.constant 0 : i32
    return %arg0, %c0_i32, %c0_i32_0 : i32, i32, i32
  }
  func.func @transform_1(%arg0: i32) -> (i32, i32) {
    %c0_i32 = arith.constant 0 : i32
    %c0_i32_0 = arith.constant 0 : i32
    %c0_i32_1 = arith.constant 0 : i32
    return %c0_i32, %c0_i32_0 : i32, i32
  }
  func.func @transform_2(%arg0: i32) -> (i32, i32) {
    %c0_i32 = arith.constant 0 : i32
    %c0_i32_0 = arith.constant 0 : i32
    %c0_i32_1 = arith.constant 0 : i32
    return %c0_i32, %c0_i32_0 : i32, i32
  }
  func.func @transform_3(%arg0: i32) -> (i32, i32) {
    %c0_i32 = arith.constant 0 : i32
    %c0_i32_0 = arith.constant 0 : i32
    return %c0_i32, %arg0 : i32, i32
  }
  func.func @transform_4(%arg0: i32) -> (i32, i32, i32) {
    %c0_i32 = arith.constant 0 : i32
    %c0_i32_0 = arith.constant 0 : i32
    %c0_i32_1 = arith.constant 0 : i32
    return %arg0, %c0_i32, %c0_i32_0 : i32, i32, i32
  }
}

</mosaic_0001>

<llo_original>
// kernel: tpu_custom_call.1
$region0: #{tpu_custom_call.1}
  #allocation0 [shape = 'u32[]', space=smem, size = 0x4, offset = 0x4, fixed_abs, tag = 'smem constant byte address 0x4 - core index']
  #allocation1 [shape = 'u32[72,128]{1,0:T(1,128)}', space=vmem, size = 0x9000, scoped, tag = 'internal scratch']
  %s0 = inlined_call_operand.hbm [shape: f32[2,4,256], index: 0, kind: input, shape index: {}]
  %s1 = inlined_call_operand.vmem [shape: f32[4,4], index: 1, kind: input, shape index: {}]
  %s2 = inlined_call_operand.vmem [shape: f32[4,1], index: 2, kind: input, shape index: {}]
  %s3 = inlined_call_operand.hbm [shape: f32[4,512], index: 3, kind: output, shape index: {0}]
  %s4 = inlined_call_operand.vmem [shape: f32[2,4,2], index: 4, kind: output, shape index: {1}]
  %5 = xla_tuple %s3, %s4
  %s6 = sld [smem:[#allocation0]]
  $region57: #{tpu_custom_call.1} parent=0
    _
  %s8 = ssub.s32 1, %s6
  %s9 = scalar_select 0, %s8, %s6
  $region1: #{tpu_custom_call.1} parent=0
    #allocation2 [shape = 'u8[8192]{0}', space=vmem, size = 0x2000, scoped, tag = 'input window, operand 0']
    #allocation3 [shape = 's32[2]{0}', space=sflag, size = 0x8, scoped, tag = 'scoped memory for tpu_custom_call.1']
    #allocation4 [shape = 's32[2]{0}', space=sflag, size = 0x8, scoped, tag = 'scoped memory for tpu_custom_call.1']
    #allocation5 [shape = 'u8[8192]{0}', space=vmem, size = 0x2000, scoped, tag = 'output window, operand 0']
    %10 = vsyncpa [#allocation3], 0
    %s11 = scalar_lea.sflag [#allocation3], 1
    %12 = vsyncpa %s11, 0
    %13 = vsyncpa [#allocation4], 0
    %s14 = scalar_lea.sflag [#allocation4], 1
    %15 = vsyncpa %s14, 0
    loop: start=0, step=1, limit=4
    $region2: #{tpu_custom_call.1} parent=1 // loop_pre_header
      _
    $region3: #{tpu_custom_call.1} parent=1 // loop_header
      %s17 = sphi 0, %s21
      %p18 = scmp.ge.s32.totalorder %s17, 4
      %s27 = sphi 0, %s29
      %s30 = sphi 0, %s27
      %s31 = sphi 0, %s30
      %s47 = sphi 0, %s31
      %s51 = sphi 0, %s51
      %s53 = sphi 0, %s51
      %s54 = sphi 0, %s53
      %s68 = sphi 0, %s54
      %s72 = sphi 0, %s72
      %s74 = sphi 0, %s72
      %s75 = sphi 0, %s74
      %s89 = sphi 0, %s75
      %s95 = sphi 0, %s97
      %s98 = sphi 0, %s95
      %s99 = sphi 0, %s98
      %s115 = sphi 0, %s99
      %s121 = sphi 0, %s123
      %s124 = sphi 0, %s121
      %s125 = sphi 0, %s124
      %s141 = sphi 0, %s125
    $region4: #{tpu_custom_call.1} parent=1 // loop_header_branch
      %20 = sbr.rel (%p18) target = $region8
    $region5: #{tpu_custom_call.1} parent=1 // loop_body
      %s22 = ssub.s32 %s17, 1
      %s23 = ssub.s32 %s17, 2
      %s24 = sadd.s32 %s17, 1
      %s25 = ssub.s32 %s17, %s24
      %p26 = scmp.eq.s32.totalorder %s25, 0
      %s28 = sadd.s32 %s27, 1
      %s29 = scalar_select %p26, %s27, %s28
      %p32 = pneg %p26
      %p33 = scmp.eq.s32.totalorder %s17, 1
      %p34 = por %p32, %p33
      %p35 = scmp.ne.s32.totalorder %s27, %s30
      %p36 = scmp.eq.s32.totalorder %s17, 0
      %p37 = por %p35, %p36
      %p38 = scmp.ne.s32.totalorder %s27, %s30
      %p39 = scmp.eq.s32.totalorder %s22, 1
      %p40 = por %p38, %p39
      %p41 = scmp.ne.s32.totalorder %s30, %s31
      %p42 = scmp.eq.s32.totalorder %s22, 0
      %p43 = por %p41, %p42
      %p44 = scmp.ne.s32.totalorder %s30, %s31
      %p45 = scmp.eq.s32.totalorder %s23, 1
      %p46 = por %p44, %p45
      %p48 = scmp.ne.s32.totalorder %s31, %s47
      %p49 = scmp.eq.s32.totalorder %s23, 0
      %p50 = por %p48, %p49
      %s52 = sadd.s32 %s51, 1
      %p55 = scmp.eq.s32.totalorder %s17, 1
      %p56 = scmp.ne.s32.totalorder %s51, %s53
      %p57 = scmp.eq.s32.totalorder %s17, 0
      %p58 = por %p56, %p57
      %p59 = scmp.ne.s32.totalorder %s51, %s53
      %p60 = scmp.eq.s32.totalorder %s22, 1
      %p61 = por %p59, %p60
      %p62 = scmp.ne.s32.totalorder %s53, %s54
      %p63 = scmp.eq.s32.totalorder %s22, 0
      %p64 = por %p62, %p63
      %p65 = scmp.ne.s32.totalorder %s53, %s54
      %p66 = scmp.eq.s32.totalorder %s23, 1
      %p67 = por %p65, %p66
      %p69 = scmp.ne.s32.totalorder %s54, %s68
      %p70 = scmp.eq.s32.totalorder %s23, 0
      %p71 = por %p69, %p70
      %s73 = sadd.s32 %s72, 1
      %p76 = scmp.eq.s32.totalorder %s17, 1
      %p77 = scmp.ne.s32.totalorder %s72, %s74
      %p78 = scmp.eq.s32.totalorder %s17, 0
      %p79 = por %p77, %p78
      %p80 = scmp.ne.s32.totalorder %s72, %s74
      %p81 = scmp.eq.s32.totalorder %s22, 1
      %p82 = por %p80, %p81
      %p83 = scmp.ne.s32.totalorder %s74, %s75
      %p84 = scmp.eq.s32.totalorder %s22, 0
      %p85 = por %p83, %p84
      %p86 = scmp.ne.s32.totalorder %s74, %s75
      %p87 = scmp.eq.s32.totalorder %s23, 1
      %p88 = por %p86, %p87
      %p90 = scmp.ne.s32.totalorder %s75, %s89
      %p91 = scmp.eq.s32.totalorder %s23, 0
      %p92 = por %p90, %p91
      %s93 = ssub.s32 %s17, %s24
      %p94 = scmp.eq.s32.totalorder %s93, 0
      %s96 = sadd.s32 %s95, 1
      %s97 = scalar_select %p94, %s95, %s96
      %p100 = pneg %p94
      %p101 = scmp.eq.s32.totalorder %s17, 1
      %p102 = por %p100, %p101
      %p103 = scmp.ne.s32.totalorder %s95, %s98
      %p104 = scmp.eq.s32.totalorder %s17, 0
      %p105 = por %p103, %p104
      %p106 = scmp.ne.s32.totalorder %s95, %s98
      %p107 = scmp.eq.s32.totalorder %s22, 1
      %p108 = por %p106, %p107
      %p109 = scmp.ne.s32.totalorder %s98, %s99
      %p110 = scmp.eq.s32.totalorder %s22, 0
      %p111 = por %p109, %p110
      %p112 = scmp.ne.s32.totalorder %s98, %s99
      %p113 = scmp.eq.s32.totalorder %s23, 1
      %p114 = por %p112, %p113
      %p116 = scmp.ne.s32.totalorder %s99, %s115
      %p117 = scmp.eq.s32.totalorder %s23, 0
      %p118 = por %p116, %p117
      %s119 = ssub.s32 %s17, %s24
      %p120 = scmp.eq.s32.totalorder %s119, 0
      %s122 = sadd.s32 %s121, 1
      %s123 = scalar_select %p120, %s121, %s122
      %p126 = pneg %p120
      %p127 = scmp.eq.s32.totalorder %s17, 1
      %p128 = por %p126, %p127
      %p129 = scmp.ne.s32.totalorder %s121, %s124
      %p130 = scmp.eq.s32.totalorder %s17, 0
      %p131 = por %p129, %p130
      %p132 = scmp.ne.s32.totalorder %s121, %s124
      %p133 = scmp.eq.s32.totalorder %s22, 1
      %p134 = por %p132, %p133
      %p135 = scmp.ne.s32.totalorder %s124, %s125
      %p136 = scmp.eq.s32.totalorder %s22, 0
      %p137 = por %p135, %p136
      %p138 = scmp.ne.s32.totalorder %s124, %s125
      %p139 = scmp.eq.s32.totalorder %s23, 1
      %p140 = por %p138, %p139
      %p142 = scmp.ne.s32.totalorder %s125, %s141
      %p143 = scmp.eq.s32.totalorder %s23, 0
      %p144 = por %p142, %p143
      %p145 = scmp.le.s32.totalorder 1, %s17
      %p146 = scmp.lt.s32.totalorder %s17, 3
      %p147 = pnand %p145, %p146
      %p148 = pneg %p147
      // Predicated region
      $region9: #{tpu_custom_call.1} parent=5 // pred_check
        _
      $region10: #{tpu_custom_call.1} parent=5 // pred_check_branch
        %150 = sbr.rel (%p147) target = $region12
      $region11: #{tpu_custom_call.1} parent=5 // pred_region
        %s151 = ssub.s32 %s17, 1
        // Predicated region
        $region13: #{tpu_custom_call.1} parent=11 // pred_check
          %p152 = pneg %p64
        $region14: #{tpu_custom_call.1} parent=11 // pred_check_branch
          %154 = sbr.rel (%p152) target = $region16
        $region15: #{tpu_custom_call.1} parent=11 // pred_region
          _
        $region16: #{tpu_custom_call.1} parent=11 // pred_fallthru
          _
        // Predicated region
        $region17: #{tpu_custom_call.1} parent=11 // pred_check
          %p155 = pneg %p85
        $region18: #{tpu_custom_call.1} parent=11 // pred_check_branch
          %157 = sbr.rel (%p155) target = $region20
        $region19: #{tpu_custom_call.1} parent=11 // pred_region
          _
        $region20: #{tpu_custom_call.1} parent=11 // pred_fallthru
          _
      $region12: #{tpu_custom_call.1} parent=5 // pred_fallthru
        _
      %p158 = scmp.lt.s32.totalorder %s17, 2
      // Predicated region
      $region21: #{tpu_custom_call.1} parent=5 // pred_check
        %p159 = pneg %p158
      $region22: #{tpu_custom_call.1} parent=5 // pred_check_branch
        %161 = sbr.rel (%p159) target = $region24
      $region23: #{tpu_custom_call.1} parent=5 // pred_region
        // Predicated region
        $region25: #{tpu_custom_call.1} parent=23 // pred_check
          %p162 = pneg %p37
        $region26: #{tpu_custom_call.1} parent=23 // pred_check_branch
          %164 = sbr.rel (%p162) target = $region28
        $region27: #{tpu_custom_call.1} parent=23 // pred_region
          %s165 = sand.u32 %s27, 1
          %s166 = scalar_lea.sflag [#allocation3], %s165
          %s167 = sand.u32 %s27, 1
          %s168 = smul.addr %s167, 8
          %s169 = scalar_lea.vmem [#allocation2], %s168
          %171 = vsyncadd %s166, 0
          %s172 = smul.addr %s17, 2
          %s173 = smul.addr %s172, 4
          %s174 = scalar_lea.hbm %s0, %s173
          %s176 = sshll.u32 %s174, 4
          %s177 = int_to_ptr.hbm [resolvable:$true] %s176
          %s178 = sshll.u32 %s169, 4
          %s179 = int_to_ptr.vmem [resolvable:$true] %s178
          %181 = dma.hbm_to_vmem [thread:$0]  %s177, 128, %s179, %s166
        $region28: #{tpu_custom_call.1} parent=23 // pred_fallthru
          _
      $region24: #{tpu_custom_call.1} parent=5 // pred_fallthru
        _
      %p182 = scmp.le.s32.totalorder 1, %s17
      %p183 = scmp.lt.s32.totalorder %s17, 3
      %p184 = pnand %p182, %p183
      %p185 = pneg %p184
      // Predicated region
      $region29: #{tpu_custom_call.1} parent=5 // pred_check
        _
      $region30: #{tpu_custom_call.1} parent=5 // pred_check_branch
        %187 = sbr.rel (%p184) target = $region32
      $region31: #{tpu_custom_call.1} parent=5 // pred_region
        %s188 = ssub.s32 %s17, 1
        %s189 = sand.u32 %s30, 1
        %s190 = scalar_lea.sflag [#allocation3], %s189
        %s191 = sand.u32 %s30, 1
        %s192 = smul.addr %s191, 8
        %s193 = scalar_lea.vmem [#allocation2], %s192
        // Predicated region
        $region33: #{tpu_custom_call.1} parent=31 // pred_check
          %p194 = pneg %p43
        $region34: #{tpu_custom_call.1} parent=31 // pred_check_branch
          %196 = sbr.rel (%p194) target = $region36
        $region35: #{tpu_custom_call.1} parent=31 // pred_region
          %198 = dma.done %s190, 128
        $region36: #{tpu_custom_call.1} parent=31 // pred_fallthru
          _
        %s199 = sand.u32 %s30, 1
        %s200 = scalar_lea.sflag [#allocation3], %s199
        %s201 = sand.u32 %s30, 1
        %s202 = smul.addr %s201, 8
        %s203 = scalar_lea.vmem [#allocation2], %s202
        %p204 = pneg %p43
        %p205 = pneg %p40
        %p206 = pneg %p64
        %p207 = pneg %p61
        %p208 = pneg %p85
        %p209 = pneg %p82
        %p210 = pneg %p111
        %p211 = pneg %p108
        %s212 = sand.u32 %s98, 1
        %s213 = scalar_lea.sflag [#allocation4], %s212
        %s214 = sand.u32 %s98, 1
        %s215 = smul.addr %s214, 8
        %s216 = scalar_lea.vmem [#allocation5], %s215
        %p217 = pneg %p137
        %p218 = pneg %p134
        %p219 = scmp.lt.s32.totalorder %s22, 1
        %s220 = scalar_select %p219, %s22, 1
        %s221 = smul.addr %s220, 4
        %s222 = scalar_lea.vmem %s4, %s221
        %s223 = smul.u32 2, %s22
        %p224 = scmp.lt.s32.totalorder %s22, 1
        %s225 = scalar_select %p224, %s22, 1
        %s226 = smul.addr %s225, 4
        %s227 = scalar_lea.vmem %s4, %s226
        %v228 = vld [vmem:[%s1] sm:$0xf]
        %v229 = vld [vmem:[%s2] sm:$0xf]
        %v230 = vld [vmem:[%s193] sm:$0xff]
        %232 = vset.pattern.permute.xlu0 0
        %233 = vperm.xlu0 %232, %v229
        %v234 = vpop.permute.xlu0 %233
        %237 = vst [vmem:[#allocation1] ss:$2 sm:$0xff] %v230
        %v238 = vld.sshfl [vmem:[#allocation1] sm:$0xff pattern:$0x75316420]
        %v239 = vld.sshfl [vmem:[#allocation1 + $0x8] sm:$0xff pattern:$0x75316420]
        %vm240 = vcmask 31744
        %v242 = vsel %vm240, %v228, 0
        %vm244 = vcmask 1043456
        %v245 = vsel %vm244, %v238, 0
        %v247 = vsel %vm244, %v239, 0
        %249 = vmatpush.msra.mxu0 0.0
        %250 = vmatpush.msra.mxu0 0.0
        %251 = vmatpush.msra.mxu0 0.0
        %252 = vmatpush.msra.mxu0 0.0
        %253 = vmatpush.msra.mxu0 0.0
        %254 = vmatpush.msra.mxu0 0.0
        %255 = vmatpush.msra.mxu0 0.0
        %256 = vmatpush.msra.mxu0 0.0
        %257 = vmatpush.msra.mxu0 0.0
        %258 = vmatpush.msra.mxu0 0.0
        %259 = vmatpush.msra.mxu0 0.0
        %260 = vmatpush.msra.mxu0 0.0
        %261 = vmatpush.msra.mxu0 0.0
        %262 = vmatpush.msra.mxu0 0.0
        %263 = vmatpush.msra.mxu0 0.0
        %264 = vmatpush.msra.mxu0 %v245
        %265 = vmatmul.f32.gmra.mxu0 %v242
        %v266 = vpop.f32.mrf.mxu0
        %v267 = vadd.f32 %v234, %v266
        %268 = vdwg.mxu0
        %269 = vmatpush.msra.mxu0 0.0
        %270 = vmatpush.msra.mxu0 0.0
        %271 = vmatpush.msra.mxu0 0.0
        %272 = vmatpush.msra.mxu0 0.0
        %273 = vmatpush.msra.mxu0 0.0
        %274 = vmatpush.msra.mxu0 0.0
        %275 = vmatpush.msra.mxu0 0.0
        %276 = vmatpush.msra.mxu0 0.0
        %277 = vmatpush.msra.mxu0 0.0
        %278 = vmatpush.msra.mxu0 0.0
        %279 = vmatpush.msra.mxu0 0.0
        %280 = vmatpush.msra.mxu0 0.0
        %281 = vmatpush.msra.mxu0 0.0
        %282 = vmatpush.msra.mxu0 0.0
        %283 = vmatpush.msra.mxu0 0.0
        %284 = vmatpush.msra.mxu0 %v247
        %285 = vmatmul.f32.gmra.mxu0 %v242
        %v286 = vpop.f32.mrf.mxu0
        %v287 = vadd.f32 %v234, %v286
        %288 = vdwg.mxu0
        %v291 = vrot.slane %v287, 4
        %v292 = vsel %vm244, %v267, %v291
        %294 = vst [vmem:[%s216] sm:$0xff] %v292
        %v295 = vsel %vm244, %v267, 0.0
        %v296 = vsel %vm244, %v287, 0.0
        %v297 = vadd.f32 %v295, %v296
        %298 = vadd.xlane.f32.xlu0 %v297
        %v299 = vpop.xlane.xlu0 %298
        %v300 = vadd.f32 %v299, 0.0
        %v301 = vmul.f32 %v267, %v267
        %v302 = vmul.f32 %v287, %v287
        %v303 = vsel %vm244, %v301, 0.0
        %v304 = vsel %vm244, %v302, 0.0
        %v305 = vadd.f32 %v303, %v304
        %306 = vadd.xlane.f32.xlu0 %v305
        %v307 = vpop.xlane.xlu0 %306
        %v308 = vadd.f32 %v307, 0.0
        %vm309 = vcmask 7168
        %v310 = vsel %vm309, %v300, %v308
        %vm311 = vcmask 11264
        %312 = vst.msk [vmem:[%s227] sm:$0xf] %vm311, %v310
        %s313 = sand.u32 %s98, 1
        %s314 = scalar_lea.sflag [#allocation4], %s313
        %s315 = sand.u32 %s98, 1
        %s316 = smul.addr %s315, 8
        %s317 = scalar_lea.vmem [#allocation5], %s316
        %p318 = scmp.lt.s32.totalorder %s22, 1
        %s319 = scalar_select %p318, %s22, 1
        %s320 = smul.addr %s319, 4
        %s321 = scalar_lea.vmem %s4, %s320
        // Predicated region
        $region37: #{tpu_custom_call.1} parent=31 // pred_check
          %p322 = pneg %p108
        $region38: #{tpu_custom_call.1} parent=31 // pred_check_branch
          %324 = sbr.rel (%p322) target = $region40
        $region39: #{tpu_custom_call.1} parent=31 // pred_region
          %s325 = smul.u32 2, %s22
          %327 = vsyncadd %s314, 0
          %s328 = smul.addr %s325, 4
          %s329 = scalar_lea.hbm %s3, %s328
          %s331 = sshll.u32 %s317, 4
          %s332 = int_to_ptr.vmem [resolvable:$true] %s331
          %s333 = sshll.u32 %s329, 4
          %s334 = int_to_ptr.hbm [resolvable:$true] %s333
          %336 = dma.vmem_to_hbm [thread:$0]  %s332, 128, %s334, %s314
        $region40: #{tpu_custom_call.1} parent=31 // pred_fallthru
          _
        // Predicated region
        $region41: #{tpu_custom_call.1} parent=31 // pred_check
          %p337 = pneg %p134
        $region42: #{tpu_custom_call.1} parent=31 // pred_check_branch
          %339 = sbr.rel (%p337) target = $region44
        $region43: #{tpu_custom_call.1} parent=31 // pred_region
          _
        $region44: #{tpu_custom_call.1} parent=31 // pred_fallthru
          _
      $region32: #{tpu_custom_call.1} parent=5 // pred_fallthru
        _
      %p340 = scmp.le.s32.totalorder 2, %s17
      // Predicated region
      $region45: #{tpu_custom_call.1} parent=5 // pred_check
        %p341 = pneg %p340
      $region46: #{tpu_custom_call.1} parent=5 // pred_check_branch
        %343 = sbr.rel (%p341) target = $region48
      $region47: #{tpu_custom_call.1} parent=5 // pred_region
        %s344 = ssub.s32 %s17, 2
        // Predicated region
        $region49: #{tpu_custom_call.1} parent=47 // pred_check
          %p345 = pneg %p114
        $region50: #{tpu_custom_call.1} parent=47 // pred_check_branch
          %347 = sbr.rel (%p345) target = $region52
        $region51: #{tpu_custom_call.1} parent=47 // pred_region
          %s348 = sand.u32 %s99, 1
          %s349 = scalar_lea.sflag [#allocation4], %s348
          %s350 = sand.u32 %s99, 1
          %s351 = smul.addr %s350, 8
          %s352 = scalar_lea.vmem [#allocation5], %s351
          %354 = dma.done %s349, 128
        $region52: #{tpu_custom_call.1} parent=47 // pred_fallthru
          _
        // Predicated region
        $region53: #{tpu_custom_call.1} parent=47 // pred_check
          %p355 = pneg %p140
        $region54: #{tpu_custom_call.1} parent=47 // pred_check_branch
          %357 = sbr.rel (%p355) target = $region56
        $region55: #{tpu_custom_call.1} parent=47 // pred_region
          %p358 = scmp.lt.s32.totalorder %s23, 1
          %s359 = scalar_select %p358, %s23, 1
          %s360 = smul.addr %s359, 4
          %s361 = scalar_lea.vmem %s4, %s360
        $region56: #{tpu_custom_call.1} parent=47 // pred_fallthru
          _
      $region48: #{tpu_custom_call.1} parent=5 // pred_fallthru
        _
    $region6: #{tpu_custom_call.1} parent=1 // loop_footer
      %s21 = sadd.s32 1, %s17
    $region7: #{tpu_custom_call.1} parent=1 // loop_footer_branch
      %16 = sbr.rel target = $region3
    $region8: #{tpu_custom_call.1} parent=1 // loop_exit
      _
    %362 = vsyncpa [#allocation3], 1
    %s363 = scalar_lea.sflag [#allocation3], 1
    %364 = vsyncpa %s363, 1
    %365 = vsyncpa [#allocation4], 1
    %s366 = scalar_lea.sflag [#allocation4], 1
    %367 = vsyncpa %s366, 1

</llo_original>
